<compile_context>
chip_gen: v6e
topology: v6e:2x2x1
jax: 0.10.0
libtpu: 0.0.40
codegen_flags: <defaults>
</compile_context>

<pallas_src>
import jax
import jax.numpy as jnp
from jax.experimental import pallas as pl
from jax.experimental.pallas import tpu as pltpu


# ----------------------------- weight packing ------------------------------
def _band_weights_packed(w_hwio, width):
    """Banded (Toeplitz) weights with input channels folded into K.

    B[dy, j*ci + c, x*co + o] = w_hwio[dy, j - x + 1, c, o]  (0 <= j-x+1 < 3)
    Width 'same' zero-padding is implicit (out-of-range taps are dropped).
    """
    kh, kw, ci, co = w_hwio.shape
    j = jnp.arange(width)[:, None]
    x = jnp.arange(width)[None, :]
    dx = j - x + 1                                   # (width, width)
    valid = (dx >= 0) & (dx < kw)
    taps = w_hwio[:, jnp.clip(dx, 0, kw - 1)]        # (kh, j, x, ci, co)
    taps = jnp.where(valid[None, :, :, None, None], taps, 0)
    # (dy, j, x, c, o) -> (dy, j, c, x, o) -> (kh, width*ci, width*co)
    return jnp.transpose(taps, (0, 1, 3, 2, 4)).reshape(kh, width * ci, width * co)


def _pick_batch_block(n, h):
    """Largest divisor of n keeping the stacked M = nb*H around one MXU tile."""
    cap = max(1, 128 // max(h, 1))
    best = 1
    for d in range(1, n + 1):
        if n % d == 0 and d <= cap:
            best = d
    return best


# --------------------------------- kernel ----------------------------------
def _double_conv_kernel(x_ref, w1_ref, w2_ref, b1_ref, b2_ref, o_ref,
                        xpad_ref, mid_ref):
    """Fused (Conv3x3 'same' + ReLU) x 2 for a block of `nb` batch elements.

    x_ref   : (nb, H, W*Cin)        lane-packed input block
    w1_ref  : (3, W*Cin, W*Cmid)    banded conv1 weights (channels folded in K)
    w2_ref  : (3, W*Cmid, W*Cout)   banded conv2 weights (channels folded in K)
    b1_ref  : (1, W*Cmid) f32       lane-packed bias 1
    b2_ref  : (1, W*Cout) f32       lane-packed bias 2
    o_ref   : (nb, H, W*Cout)       lane-packed output block (lane dense)
    xpad_ref: (nb, H+2, W*Cin)      scratch: height-padded input
    mid_ref : (nb, H+2, W*Cmid)     scratch: height-padded intermediate (VMEM only)
    """
    nb, h, wcin = x_ref.shape
    wcm = mid_ref.shape[2]
    wco = o_ref.shape[2]
    mm_dt = xpad_ref.dtype

    # ---- stage input: zero ONLY the 2 halo rows, single wide interior copy --
    xpad_ref[:, 0:1, :] = jnp.zeros((nb, 1, wcin), mm_dt)
    xpad_ref[:, h + 1:h + 2, :] = jnp.zeros((nb, 1, wcin), mm_dt)
    xpad_ref[:, 1:h + 1, :] = x_ref[...].astype(mm_dt)

    # ---- conv1 + ReLU: 3 MXU matmuls, channels in K, batch stacked into M ---
    acc = jnp.broadcast_to(b1_ref[...], (nb * h, wcm)).astype(jnp.float32)
    for dy in range(3):
        lhs = xpad_ref[:, dy:dy + h, :].reshape(nb * h, wcin)
        acc = acc + jnp.dot(lhs, w1_ref[dy], preferred_element_type=jnp.float32)
    act = jnp.maximum(acc, 0.0)                      # (nb*H, W*Cmid), f32

    # ---- stage intermediate (never leaves VMEM), halo-only zeroing ----------
    mid_ref[:, 0:1, :] = jnp.zeros((nb, 1, wcm), mm_dt)
    mid_ref[:, h + 1:h + 2, :] = jnp.zeros((nb, 1, wcm), mm_dt)
    mid_ref[:, 1:h + 1, :] = act.reshape(nb, h, wcm).astype(mm_dt)

    # ---- conv2 + ReLU: 3 MXU matmuls --------------------------------------
    acc2 = jnp.broadcast_to(b2_ref[...], (nb * h, wco)).astype(jnp.float32)
    for dy in range(3):
        lhs = mid_ref[:, dy:dy + h, :].reshape(nb * h, wcm)
        acc2 = acc2 + jnp.dot(lhs, w2_ref[dy], preferred_element_type=jnp.float32)
    o_ref[...] = jnp.maximum(acc2, 0.0).reshape(nb, h, wco).astype(o_ref.dtype)


# -------------------------------- wrapper -----------------------------------
def double_conv(x_nchw, params, *, batch_block=None, force_bf16_matmul=False):
    """Forward of DoubleConv: (Conv3x3 'same' -> ReLU) x 2. NCHW in / NCHW out."""
    (w1, b1), (w2, b2) = params
    n, cin, h, w = x_nchw.shape
    cmid = w1.shape[-1]
    cout = w2.shape[-1]
    out_dt = x_nchw.dtype
    mm_dt = (jnp.bfloat16 if (force_bf16_matmul or out_dt == jnp.bfloat16)
             else jnp.float32)

    nb = _pick_batch_block(n, h) if batch_block is None else batch_block
    assert n % nb == 0, "batch_block must divide the batch size"

    # One wrapper layout pass: NCHW -> lane-packed (N, H, W*Cin).
    x_packed = jnp.transpose(x_nchw, (0, 2, 3, 1)).reshape(n, h, w * cin)
    x_packed = x_packed.astype(mm_dt)

    # Tiny one-time parameter transform (done by XLA, outside the kernel).
    bw1 = _band_weights_packed(w1, w).astype(mm_dt)           # (3, W*Cin,  W*Cmid)
    bw2 = _band_weights_packed(w2, w).astype(mm_dt)           # (3, W*Cmid, W*Cout)
    b1p = jnp.tile(b1.astype(jnp.float32), w).reshape(1, w * cmid)
    b2p = jnp.tile(b2.astype(jnp.float32), w).reshape(1, w * cout)

    out_packed = pl.pallas_call(
        _double_conv_kernel,
        out_shape=jax.ShapeDtypeStruct((n, h, w * cout), out_dt),
        grid=(n // nb,),
        in_specs=[
            pl.BlockSpec((nb, h, w * cin), lambda i: (i, 0, 0)),
            pl.BlockSpec((3, w * cin, w * cmid), lambda i: (0, 0, 0)),
            pl.BlockSpec((3, w * cmid, w * cout), lambda i: (0, 0, 0)),
            pl.BlockSpec((1, w * cmid), lambda i: (0, 0)),
            pl.BlockSpec((1, w * cout), lambda i: (0, 0)),
        ],
        out_specs=pl.BlockSpec((nb, h, w * cout), lambda i: (i, 0, 0)),
        scratch_shapes=[
            pltpu.VMEM((nb, h + 2, w * cin), mm_dt),    # height-padded input
            pltpu.VMEM((nb, h + 2, w * cmid), mm_dt),   # height-padded intermediate
        ],
        compiler_params=pltpu.CompilerParams(
            dimension_semantics=("parallel",),          # batch blocks across TCs (v7x)
        ),
    )(x_packed, bw1, bw2, b1p, b2p)

    # Unpack (N, H, W*Cout) -> NCHW at the module boundary only.
    return out_packed.reshape(n, h, w, cout).transpose(0, 3, 1, 2)


# ------------------------------- reference ----------------------------------
def init_conv_params(key, cin, cout):
    """Deterministic Kaiming-uniform-style init (matches nn.Conv2d bound). HWIO."""
    k_w, k_b = jax.random.split(key)
    fan_in = cin * 3 * 3
    bound = 1.0 / jnp.sqrt(fan_in)
    w = jax.random.uniform(k_w, (3, 3, cin, cout), jnp.float32, -bound, bound)
    b = jax.random.uniform(k_b, (cout,), jnp.float32, -bound, bound)
    return w, b


def _ref_double_conv(x_nchw, params):
    """Pure-JAX reference (lax conv) for correctness check."""
    x = x_nchw.astype(jnp.float32)
    for w, b in params:
        y = jax.lax.conv_general_dilated(
            x, w, window_strides=(1, 1), padding="SAME",
            dimension_numbers=("NCHW", "HWIO", "NCHW"))
        x = jnp.maximum(y + b[None, :, None, None], 0.0)
    return x


if __name__ == "__main__":
    key = jax.random.PRNGKey(0)
    k_x, k_c1, k_c2 = jax.random.split(key, 3)

    in_channels, out_channels = 4, 8
    x = jax.random.normal(k_x, (2, in_channels, 16, 16), jnp.float32)  # NCHW

    params = (
        init_conv_params(k_c1, in_channels, out_channels),
        init_conv_params(k_c2, out_channels, out_channels),
    )

    ref = _ref_double_conv(x, params)

    fwd = jax.jit(double_conv, static_argnames=("batch_block", "force_bf16_matmul"))

    # f32 path (operands f32, tight check).
    out = jax.block_until_ready(fwd(x, params))
    assert out.shape == (2, out_channels, 16, 16)
    assert jnp.allclose(out, ref, atol=1e-4, rtol=1e-4)

    # bf16 input path (bf16 operands, f32 accumulate) -- v6e/v7x recommendation.
    out_bf16 = jax.block_until_ready(fwd(x.astype(jnp.bfloat16), params))
    assert jnp.allclose(out_bf16.astype(jnp.float32), ref, atol=5e-2, rtol=5e-2)

    # f32 input with bf16 MXU operands (v5e recommendation), f32 accumulate/ReLU.
    out_mixed = jax.block_until_ready(fwd(x, params, force_bf16_matmul=True))
    assert jnp.allclose(out_mixed, ref, atol=5e-2, rtol=5e-2)

    print("KERNEL_OK")
</pallas_src>

<mosaic_0001>
module attributes {stable_mosaic.version = 11 : i64} {
  func.func @_double_conv_kernel(%arg0: i32, %arg1: memref<2x16x64xf32, #tpu.memory_space<vmem>>, %arg2: memref<3x64x128xf32, #tpu.memory_space<vmem>>, %arg3: memref<3x128x128xf32, #tpu.memory_space<vmem>>, %arg4: memref<1x128xf32, #tpu.memory_space<vmem>>, %arg5: memref<1x128xf32, #tpu.memory_space<vmem>>, %arg6: memref<2x16x128xf32, #tpu.memory_space<vmem>>, %arg7: memref<2x18x64xf32, #tpu.memory_space<vmem>>, %arg8: memref<2x18x128xf32, #tpu.memory_space<vmem>>) attributes {dimension_semantics = [#tpu.dimension_semantics<parallel>], iteration_bounds = array<i64: 1>, scalar_prefetch = 0 : i64, scratch_operands = 2 : i64, tpu.core_type = #tpu.core_type<tc>, window_params = [{transform_indices = @transform_0, window_bounds = array<i64: 2, 16, 64>}, {pipeline_mode = #tpu.pipeline_mode<synchronous>, transform_indices = @transform_1, window_bounds = array<i64: 3, 64, 128>}, {pipeline_mode = #tpu.pipeline_mode<synchronous>, transform_indices = @transform_2, window_bounds = array<i64: 3, 128, 128>}, {pipeline_mode = #tpu.pipeline_mode<synchronous>, transform_indices = @transform_3, window_bounds = array<i64: 1, 128>}, {pipeline_mode = #tpu.pipeline_mode<synchronous>, transform_indices = @transform_4, window_bounds = array<i64: 1, 128>}, {transform_indices = @transform_5, window_bounds = array<i64: 2, 16, 128>}]} {
    %cst = arith.constant 0.000000e+00 : f32
    %0 = vector.broadcast %cst : f32 to vector<2x1x64xf32>
    %c0 = arith.constant 0 : index
    %c0_0 = arith.constant 0 : index
    %c0_1 = arith.constant 0 : index
    %1 = vector.load %arg7[%c0, %c0_0, %c0_1] : memref<2x18x64xf32, #tpu.memory_space<vmem>>, vector<2x1x64xf32>
    tpu.vector_store %arg7[%c0, %c0_0, %c0_1], %0 {strides = array<i32>} : memref<2x18x64xf32, #tpu.memory_space<vmem>>, vector<2x1x64xf32>,
    %cst_2 = arith.constant 0.000000e+00 : f32
    %2 = vector.broadcast %cst_2 : f32 to vector<2x1x64xf32>
    %c0_3 = arith.constant 0 : index
    %c17 = arith.constant 17 : index
    %c0_4 = arith.constant 0 : index
    %3 = vector.load %arg7[%c0_3, %c17, %c0_4] : memref<2x18x64xf32, #tpu.memory_space<vmem>>, vector<2x1x64xf32>
    tpu.vector_store %arg7[%c0_3, %c17, %c0_4], %2 {strides = array<i32>} : memref<2x18x64xf32, #tpu.memory_space<vmem>>, vector<2x1x64xf32>,
    %c0_5 = arith.constant 0 : index
    %c0_6 = arith.constant 0 : index
    %c0_7 = arith.constant 0 : index
    %4 = vector.load %arg1[%c0_5, %c0_6, %c0_7] : memref<2x16x64xf32, #tpu.memory_space<vmem>>, vector<2x16x64xf32>
    %c0_8 = arith.constant 0 : index
    %c1 = arith.constant 1 : index
    %c0_9 = arith.constant 0 : index
    %5 = vector.load %arg7[%c0_8, %c1, %c0_9] : memref<2x18x64xf32, #tpu.memory_space<vmem>>, vector<2x16x64xf32>
    tpu.vector_store %arg7[%c0_8, %c1, %c0_9], %4 {strides = array<i32>} : memref<2x18x64xf32, #tpu.memory_space<vmem>>, vector<2x16x64xf32>,
    %c0_10 = arith.constant 0 : index
    %c0_11 = arith.constant 0 : index
    %6 = vector.load %arg4[%c0_10, %c0_11] : memref<1x128xf32, #tpu.memory_space<vmem>>, vector<1x128xf32>
    %7 = vector.shape_cast %6 : vector<1x128xf32> to vector<1x128xf32>
    %8 = vector.broadcast %7 : vector<1x128xf32> to vector<32x128xf32>
    %c0_12 = arith.constant 0 : index
    %c0_13 = arith.constant 0 : index
    %c0_14 = arith.constant 0 : index
    %9 = vector.load %arg7[%c0_12, %c0_13, %c0_14] : memref<2x18x64xf32, #tpu.memory_space<vmem>>, vector<2x16x64xf32>
    %10 = vector.shape_cast %9 : vector<2x16x64xf32> to vector<32x64xf32>
    %c0_15 = arith.constant 0 : index
    %c0_16 = arith.constant 0 : index
    %c0_17 = arith.constant 0 : index
    %11 = vector.load %arg2[%c0_15, %c0_16, %c0_17] : memref<3x64x128xf32, #tpu.memory_space<vmem>>, vector<1x64x128xf32>
    %12 = vector.shape_cast %11 : vector<1x64x128xf32> to vector<64x128xf32>
    %cst_18 = arith.constant dense<0.000000e+00> : vector<32x128xf32>
    %13 = tpu.matmul %10, %12, %cst_18 {dimension_numbers = #tpu.dot_dimension_numbers<[1], [0], [0], [1], [0, 0, 1, 1], [], []>} : vector<32x64xf32>, vector<64x128xf32>, vector<32x128xf32> -> vector<32x128xf32>
    %14 = arith.addf %8, %13 : vector<32x128xf32>
    %c0_19 = arith.constant 0 : index
    %c1_20 = arith.constant 1 : index
    %c0_21 = arith.constant 0 : index
    %15 = vector.load %arg7[%c0_19, %c1_20, %c0_21] : memref<2x18x64xf32, #tpu.memory_space<vmem>>, vector<2x16x64xf32>
    %16 = vector.shape_cast %15 : vector<2x16x64xf32> to vector<32x64xf32>
    %c1_22 = arith.constant 1 : index
    %c0_23 = arith.constant 0 : index
    %c0_24 = arith.constant 0 : index
    %17 = vector.load %arg2[%c1_22, %c0_23, %c0_24] : memref<3x64x128xf32, #tpu.memory_space<vmem>>, vector<1x64x128xf32>
    %18 = vector.shape_cast %17 : vector<1x64x128xf32> to vector<64x128xf32>
    %cst_25 = arith.constant dense<0.000000e+00> : vector<32x128xf32>
    %19 = tpu.matmul %16, %18, %cst_25 {dimension_numbers = #tpu.dot_dimension_numbers<[1], [0], [0], [1], [0, 0, 1, 1], [], []>} : vector<32x64xf32>, vector<64x128xf32>, vector<32x128xf32> -> vector<32x128xf32>
    %20 = arith.addf %14, %19 : vector<32x128xf32>
    %c0_26 = arith.constant 0 : index
    %c2 = arith.constant 2 : index
    %c0_27 = arith.constant 0 : index
    %21 = vector.load %arg7[%c0_26, %c2, %c0_27] : memref<2x18x64xf32, #tpu.memory_space<vmem>>, vector<2x16x64xf32>
    %22 = vector.shape_cast %21 : vector<2x16x64xf32> to vector<32x64xf32>
    %c2_28 = arith.constant 2 : index
    %c0_29 = arith.constant 0 : index
    %c0_30 = arith.constant 0 : index
    %23 = vector.load %arg2[%c2_28, %c0_29, %c0_30] : memref<3x64x128xf32, #tpu.memory_space<vmem>>, vector<1x64x128xf32>
    %24 = vector.shape_cast %23 : vector<1x64x128xf32> to vector<64x128xf32>
    %cst_31 = arith.constant dense<0.000000e+00> : vector<32x128xf32>
    %25 = tpu.matmul %22, %24, %cst_31 {dimension_numbers = #tpu.dot_dimension_numbers<[1], [0], [0], [1], [0, 0, 1, 1], [], []>} : vector<32x64xf32>, vector<64x128xf32>, vector<32x128xf32> -> vector<32x128xf32>
    %26 = arith.addf %20, %25 : vector<32x128xf32>
    %cst_32 = arith.constant 0.000000e+00 : f32
    %27 = vector.broadcast %cst_32 : f32 to vector<32x128xf32>
    %28 = arith.maximumf %26, %27 : vector<32x128xf32>
    %cst_33 = arith.constant 0.000000e+00 : f32
    %29 = vector.broadcast %cst_33 : f32 to vector<2x1x128xf32>
    %c0_34 = arith.constant 0 : index
    %c0_35 = arith.constant 0 : index
    %c0_36 = arith.constant 0 : index
    %30 = vector.load %arg8[%c0_34, %c0_35, %c0_36] : memref<2x18x128xf32, #tpu.memory_space<vmem>>, vector<2x1x128xf32>
    tpu.vector_store %arg8[%c0_34, %c0_35, %c0_36], %29 {strides = array<i32>} : memref<2x18x128xf32, #tpu.memory_space<vmem>>, vector<2x1x128xf32>,
    %cst_37 = arith.constant 0.000000e+00 : f32
    %31 = vector.broadcast %cst_37 : f32 to vector<2x1x128xf32>
    %c0_38 = arith.constant 0 : index
    %c17_39 = arith.constant 17 : index
    %c0_40 = arith.constant 0 : index
    %32 = vector.load %arg8[%c0_38, %c17_39, %c0_40] : memref<2x18x128xf32, #tpu.memory_space<vmem>>, vector<2x1x128xf32>
    tpu.vector_store %arg8[%c0_38, %c17_39, %c0_40], %31 {strides = array<i32>} : memref<2x18x128xf32, #tpu.memory_space<vmem>>, vector<2x1x128xf32>,
    %33 = vector.shape_cast %28 : vector<32x128xf32> to vector<2x16x128xf32>
    %c0_41 = arith.constant 0 : index
    %c1_42 = arith.constant 1 : index
    %c0_43 = arith.constant 0 : index
    %34 = vector.load %arg8[%c0_41, %c1_42, %c0_43] : memref<2x18x128xf32, #tpu.memory_space<vmem>>, vector<2x16x128xf32>
    tpu.vector_store %arg8[%c0_41, %c1_42, %c0_43], %33 {strides = array<i32>} : memref<2x18x128xf32, #tpu.memory_space<vmem>>, vector<2x16x128xf32>,
    %c0_44 = arith.constant 0 : index
    %c0_45 = arith.constant 0 : index
    %35 = vector.load %arg5[%c0_44, %c0_45] : memref<1x128xf32, #tpu.memory_space<vmem>>, vector<1x128xf32>
    %36 = vector.shape_cast %35 : vector<1x128xf32> to vector<1x128xf32>
    %37 = vector.broadcast %36 : vector<1x128xf32> to vector<32x128xf32>
    %c0_46 = arith.constant 0 : index
    %c0_47 = arith.constant 0 : index
    %c0_48 = arith.constant 0 : index
    %38 = vector.load %arg8[%c0_46, %c0_47, %c0_48] : memref<2x18x128xf32, #tpu.memory_space<vmem>>, vector<2x16x128xf32>
    %39 = vector.shape_cast %38 : vector<2x16x128xf32> to vector<32x128xf32>
    %c0_49 = arith.constant 0 : index
    %c0_50 = arith.constant 0 : index
    %c0_51 = arith.constant 0 : index
    %40 = vector.load %arg3[%c0_49, %c0_50, %c0_51] : memref<3x128x128xf32, #tpu.memory_space<vmem>>, vector<1x128x128xf32>
    %41 = vector.shape_cast %40 : vector<1x128x128xf32> to vector<128x128xf32>
    %cst_52 = arith.constant dense<0.000000e+00> : vector<32x128xf32>
    %42 = tpu.matmul %39, %41, %cst_52 {dimension_numbers = #tpu.dot_dimension_numbers<[1], [0], [0], [1], [0, 0, 1, 1], [], []>} : vector<32x128xf32>, vector<128x128xf32>, vector<32x128xf32> -> vector<32x128xf32>
    %43 = arith.addf %37, %42 : vector<32x128xf32>
    %c0_53 = arith.constant 0 : index
    %c1_54 = arith.constant 1 : index
    %c0_55 = arith.constant 0 : index
    %44 = vector.load %arg8[%c0_53, %c1_54, %c0_55] : memref<2x18x128xf32, #tpu.memory_space<vmem>>, vector<2x16x128xf32>
    %45 = vector.shape_cast %44 : vector<2x16x128xf32> to vector<32x128xf32>
    %c1_56 = arith.constant 1 : index
    %c0_57 = arith.constant 0 : index
    %c0_58 = arith.constant 0 : index
    %46 = vector.load %arg3[%c1_56, %c0_57, %c0_58] : memref<3x128x128xf32, #tpu.memory_space<vmem>>, vector<1x128x128xf32>
    %47 = vector.shape_cast %46 : vector<1x128x128xf32> to vector<128x128xf32>
    %cst_59 = arith.constant dense<0.000000e+00> : vector<32x128xf32>
    %48 = tpu.matmul %45, %47, %cst_59 {dimension_numbers = #tpu.dot_dimension_numbers<[1], [0], [0], [1], [0, 0, 1, 1], [], []>} : vector<32x128xf32>, vector<128x128xf32>, vector<32x128xf32> -> vector<32x128xf32>
    %49 = arith.addf %43, %48 : vector<32x128xf32>
    %c0_60 = arith.constant 0 : index
    %c2_61 = arith.constant 2 : index
    %c0_62 = arith.constant 0 : index
    %50 = vector.load %arg8[%c0_60, %c2_61, %c0_62] : memref<2x18x128xf32, #tpu.memory_space<vmem>>, vector<2x16x128xf32>
    %51 = vector.shape_cast %50 : vector<2x16x128xf32> to vector<32x128xf32>
    %c2_63 = arith.constant 2 : index
    %c0_64 = arith.constant 0 : index
    %c0_65 = arith.constant 0 : index
    %52 = vector.load %arg3[%c2_63, %c0_64, %c0_65] : memref<3x128x128xf32, #tpu.memory_space<vmem>>, vector<1x128x128xf32>
    %53 = vector.shape_cast %52 : vector<1x128x128xf32> to vector<128x128xf32>
    %cst_66 = arith.constant dense<0.000000e+00> : vector<32x128xf32>
    %54 = tpu.matmul %51, %53, %cst_66 {dimension_numbers = #tpu.dot_dimension_numbers<[1], [0], [0], [1], [0, 0, 1, 1], [], []>} : vector<32x128xf32>, vector<128x128xf32>, vector<32x128xf32> -> vector<32x128xf32>
    %55 = arith.addf %49, %54 : vector<32x128xf32>
    %cst_67 = arith.constant 0.000000e+00 : f32
    %56 = vector.broadcast %cst_67 : f32 to vector<32x128xf32>
    %57 = arith.maximumf %55, %56 : vector<32x128xf32>
    %58 = vector.shape_cast %57 : vector<32x128xf32> to vector<2x16x128xf32>
    %c0_68 = arith.constant 0 : index
    %c0_69 = arith.constant 0 : index
    %c0_70 = arith.constant 0 : index
    %59 = vector.load %arg6[%c0_68, %c0_69, %c0_70] : memref<2x16x128xf32, #tpu.memory_space<vmem>>, vector<2x16x128xf32>
    tpu.vector_store %arg6[%c0_68, %c0_69, %c0_70], %58 {strides = array<i32>} : memref<2x16x128xf32, #tpu.memory_space<vmem>>, vector<2x16x128xf32>,
    return
  }
  func.func @transform_0(%arg0: i32) -> (i32, i32, i32) {
    %c0_i32 = arith.constant 0 : i32
    %c0_i32_0 = arith.constant 0 : i32
    %c0_i32_1 = arith.constant 0 : i32
    return %arg0, %c0_i32, %c0_i32_0 : i32, i32, i32
  }
  func.func @transform_1(%arg0: i32) -> (i32, i32, i32) {
    %c0_i32 = arith.constant 0 : i32
    %c0_i32_0 = arith.constant 0 : i32
    %c0_i32_1 = arith.constant 0 : i32
    %c0_i32_2 = arith.constant 0 : i32
    return %c0_i32, %c0_i32_0, %c0_i32_1 : i32, i32, i32
  }
  func.func @transform_2(%arg0: i32) -> (i32, i32, i32) {
    %c0_i32 = arith.constant 0 : i32
    %c0_i32_0 = arith.constant 0 : i32
    %c0_i32_1 = arith.constant 0 : i32
    %c0_i32_2 = arith.constant 0 : i32
    return %c0_i32, %c0_i32_0, %c0_i32_1 : i32, i32, i32
  }
  func.func @transform_3(%arg0: i32) -> (i32, i32) {
    %c0_i32 = arith.constant 0 : i32
    %c0_i32_0 = arith.constant 0 : i32
    %c0_i32_1 = arith.constant 0 : i32
    return %c0_i32, %c0_i32_0 : i32, i32
  }
  func.func @transform_4(%arg0: i32) -> (i32, i32) {
    %c0_i32 = arith.constant 0 : i32
    %c0_i32_0 = arith.constant 0 : i32
    %c0_i32_1 = arith.constant 0 : i32
    return %c0_i32, %c0_i32_0 : i32, i32
  }
  func.func @transform_5(%arg0: i32) -> (i32, i32, i32) {
    %c0_i32 = arith.constant 0 : i32
    %c0_i32_0 = arith.constant 0 : i32
    %c0_i32_1 = arith.constant 0 : i32
    return %arg0, %c0_i32, %c0_i32_0 : i32, i32, i32
  }
}

</mosaic_0001>

<llo_original>
// kernel: tile.13
$region0: #{tile.13}
  #allocation0 [shape = 's32[1]{0}', space=sflag, size = 0x4, scoped, tag = 'scoped memory for tile.13']
  %s0 = inlined_call_operand.vmem [shape: f32[8], index: 0, kind: input, shape index: {}]
  %s1 = inlined_call_operand.vmem [shape: f32[16,8], index: 1, kind: output, shape index: {}]
  // Predicated region
  $region2: #{tile.13} parent=0 // pred_check
    _
  $region3: #{tile.13} parent=0 // pred_check_branch
    %3 = sbr.rel (0) target = $region5
  $region4: #{tile.13} parent=0 // pred_region
    _
  $region5: #{tile.13} parent=0 // pred_fallthru
    _
  %v4 = vld [vmem:[%s0] ss:$0 sm:$0xff]
  %5 = vst [vmem:[%s1] sm:$0xff] %v4
  %s6 = scalar_lea.vmem %s1, 8
  %7 = vst [vmem:[%s6] sm:$0xff] %v4

// kernel: tile.14
$region0: #{tile.14}
  %s0 = inlined_call_operand.vmem [shape: f32[16,8], index: 0, kind: input, shape index: {}]
  %s1 = inlined_call_operand.vmem [shape: f32[1,128], index: 1, kind: output, shape index: {}]
  $region1: #{tile.14} parent=0
    #allocation0 [shape = 'u8[4096]{0}', space=vmem, size = 0x1000, scoped, tag = 'scoped mem for output reshape']
    %v2 = vld [vmem:[%s0] sm:$0x1]
    %vm3 = vcmask 64512
    %4 = vst.msk [vmem:[#allocation0] sm:$0x1] %vm3, %v2
    %s5 = scalar_lea.vmem %s0, 15
    %v6 = vld [vmem:[%s5] sm:$0x1]
    %7 = vrot.lane.b32.xlu0 %v6, 120
    %v8 = vpop.permute.xlu0 %7
    %vm9 = vcmask 1048512
    %10 = vst.msk [vmem:[#allocation0] sm:$0x1] %vm9, %v8
    %s11 = scalar_lea.vmem %s0, 14
    %v12 = vld [vmem:[%s11] sm:$0x1]
    %13 = vrot.lane.b32.xlu0 %v12, 112
    %v14 = vpop.permute.xlu0 %13
    %vm15 = vcmask 982912
    %16 = vst.msk [vmem:[#allocation0] sm:$0x1] %vm15, %v14
    %s17 = scalar_lea.vmem %s0, 13
    %v18 = vld [vmem:[%s17] sm:$0x1]
    %19 = vrot.lane.b32.xlu0 %v18, 104
    %v20 = vpop.permute.xlu0 %19
    %vm21 = vcmask 917312
    %22 = vst.msk [vmem:[#allocation0] sm:$0x1] %vm21, %v20
    %s23 = scalar_lea.vmem %s0, 12
    %v24 = vld [vmem:[%s23] sm:$0x1]
    %25 = vrot.lane.b32.xlu0 %v24, 96
    %v26 = vpop.permute.xlu0 %25
    %vm27 = vcmask 851712
    %28 = vst.msk [vmem:[#allocation0] sm:$0x1] %vm27, %v26
    %s29 = scalar_lea.vmem %s0, 11
    %v30 = vld [vmem:[%s29] sm:$0x1]
    %31 = vrot.lane.b32.xlu0 %v30, 88
    %v32 = vpop.permute.xlu0 %31
    %vm33 = vcmask 786112
    %34 = vst.msk [vmem:[#allocation0] sm:$0x1] %vm33, %v32
    %s35 = scalar_lea.vmem %s0, 10
    %v36 = vld [vmem:[%s35] sm:$0x1]
    %37 = vrot.lane.b32.xlu0 %v36, 80
    %v38 = vpop.permute.xlu0 %37
    %vm39 = vcmask 720512
    %40 = vst.msk [vmem:[#allocation0] sm:$0x1] %vm39, %v38
    %s41 = scalar_lea.vmem %s0, 9
    %v42 = vld [vmem:[%s41] sm:$0x1]
    %43 = vrot.lane.b32.xlu0 %v42, 72
    %v44 = vpop.permute.xlu0 %43
    %vm45 = vcmask 654912
    %46 = vst.msk [vmem:[#allocation0] sm:$0x1] %vm45, %v44
    %s47 = scalar_lea.vmem %s0, 8
    %v48 = vld [vmem:[%s47] sm:$0x1]
    %49 = vrot.lane.b32.xlu0 %v48, 64
    %v50 = vpop.permute.xlu0 %49
    %vm51 = vcmask 589312
    %52 = vst.msk [vmem:[#allocation0] sm:$0x1] %vm51, %v50
    %s53 = scalar_lea.vmem %s0, 7
    %v54 = vld [vmem:[%s53] sm:$0x1]
    %55 = vrot.lane.b32.xlu0 %v54, 56
    %v56 = vpop.permute.xlu0 %55
    %vm57 = vcmask 523712
    %58 = vst.msk [vmem:[#allocation0] sm:$0x1] %vm57, %v56
    %s59 = scalar_lea.vmem %s0, 6
    %v60 = vld [vmem:[%s59] sm:$0x1]
    %61 = vrot.lane.b32.xlu0 %v60, 48
    %v62 = vpop.permute.xlu0 %61
    %vm63 = vcmask 458112
    %64 = vst.msk [vmem:[#allocation0] sm:$0x1] %vm63, %v62
    %s65 = scalar_lea.vmem %s0, 5
    %v66 = vld [vmem:[%s65] sm:$0x1]
    %67 = vrot.lane.b32.xlu0 %v66, 40
    %v68 = vpop.permute.xlu0 %67
    %vm69 = vcmask 392512
    %70 = vst.msk [vmem:[#allocation0] sm:$0x1] %vm69, %v68
    %s71 = scalar_lea.vmem %s0, 4
    %v72 = vld [vmem:[%s71] sm:$0x1]
    %73 = vrot.lane.b32.xlu0 %v72, 32
    %v74 = vpop.permute.xlu0 %73
    %vm75 = vcmask 326912
    %76 = vst.msk [vmem:[#allocation0] sm:$0x1] %vm75, %v74
    %s77 = scalar_lea.vmem %s0, 3
    %v78 = vld [vmem:[%s77] sm:$0x1]
    %79 = vrot.lane.b32.xlu0 %v78, 24
    %v80 = vpop.permute.xlu0 %79
    %vm81 = vcmask 261312
    %82 = vst.msk [vmem:[#allocation0] sm:$0x1] %vm81, %v80
    %s83 = scalar_lea.vmem %s0, 2
    %v84 = vld [vmem:[%s83] sm:$0x1]
    %85 = vrot.lane.b32.xlu0 %v84, 16
    %v86 = vpop.permute.xlu0 %85
    %vm87 = vcmask 195712
    %88 = vst.msk [vmem:[#allocation0] sm:$0x1] %vm87, %v86
    %s89 = scalar_lea.vmem %s0, 1
    %v90 = vld [vmem:[%s89] sm:$0x1]
    %91 = vrot.lane.b32.xlu0 %v90, 8
    %v92 = vpop.permute.xlu0 %91
    %vm93 = vcmask 130112
    %94 = vst.msk [vmem:[#allocation0] sm:$0x1] %vm93, %v92
    %s96 = sshll.u32 1, 1
    %s97 = ssub.s32 %s96, 1
    %v99 = vld [vmem:[#allocation0] sm:%s97]
    %s100 = sshll.u32 1, 1
    %s101 = ssub.s32 %s100, 1
    %102 = vst [vmem:[%s1] sm:%s101] %v99

// kernel: double_conv.1
$region0: #{double_conv.1}
  #allocation0 [shape = 'u32[]', space=smem, size = 0x4, offset = 0x4, fixed_abs, tag = 'smem constant byte address 0x4 - core index']
  #allocation1 [shape = 'u32[144,128]{1,0:T(1,128)}', space=vmem, size = 0x12000, scoped, tag = 'internal scratch']
  #allocation2 [shape = 'f32[2,18,64]{2,1,0:T(8,128)}', space=vmem, size = 0x6000, scoped, tag = 'scratch operand']
  #allocation3 [shape = 'f32[2,18,128]{2,1,0:T(8,128)}', space=vmem, size = 0x6000, scoped, tag = 'scratch operand']
  %s0 = inlined_call_operand.vmem [shape: f32[2,16,64], index: 0, kind: input, shape index: {}]
  %s1 = inlined_call_operand.vmem [shape: f32[3,64,128], index: 1, kind: input, shape index: {}]
  %s2 = inlined_call_operand.vmem [shape: f32[3,128,128], index: 2, kind: input, shape index: {}]
  %s3 = inlined_call_operand.vmem [shape: f32[1,128], index: 3, kind: input, shape index: {}]
  %s4 = inlined_call_operand.vmem [shape: f32[1,128], index: 4, kind: input, shape index: {}]
  %s5 = inlined_call_operand.vmem [shape: f32[2,16,128], index: 5, kind: output, shape index: {}]
  %s6 = sld [smem:[#allocation0]]
  $region30: #{double_conv.1} parent=0
    _
  %s8 = ssub.s32 1, %s6
  %s9 = scalar_select 0, %s8, %s6
  // Predicated region
  $region2: #{double_conv.1} parent=0 // pred_check
    _
  $region3: #{double_conv.1} parent=0 // pred_check_branch
    %11 = sbr.rel (0) target = $region5
  $region4: #{double_conv.1} parent=0 // pred_region
    _
  $region5: #{double_conv.1} parent=0 // pred_fallthru
    _
  // Predicated region
  $region6: #{double_conv.1} parent=0 // pred_check
    _
  $region7: #{double_conv.1} parent=0 // pred_check_branch
    %13 = sbr.rel (0) target = $region9
  $region8: #{double_conv.1} parent=0 // pred_region
    _
  $region9: #{double_conv.1} parent=0 // pred_fallthru
    _
  // Predicated region
  $region10: #{double_conv.1} parent=0 // pred_check
    _
  $region11: #{double_conv.1} parent=0 // pred_check_branch
    %15 = sbr.rel (0) target = $region13
  $region12: #{double_conv.1} parent=0 // pred_region
    _
  $region13: #{double_conv.1} parent=0 // pred_fallthru
    _
  // Predicated region
  $region14: #{double_conv.1} parent=0 // pred_check
    _
  $region15: #{double_conv.1} parent=0 // pred_check_branch
    %17 = sbr.rel (0) target = $region17
  $region16: #{double_conv.1} parent=0 // pred_region
    _
  $region17: #{double_conv.1} parent=0 // pred_fallthru
    _
  // Predicated region
  $region18: #{double_conv.1} parent=0 // pred_check
    _
  $region19: #{double_conv.1} parent=0 // pred_check_branch
    %19 = sbr.rel (0) target = $region21
  $region20: #{double_conv.1} parent=0 // pred_region
    _
  $region21: #{double_conv.1} parent=0 // pred_fallthru
    _
  %vm20 = vcmask 516096
  %21 = vst.msk [vmem:[#allocation2] sm:$0x1] %vm20, 0.0
  %22 = vst.msk [vmem:[#allocation2 + $0x18] sm:$0x1] %vm20, 0.0
  %23 = vst.msk [vmem:[#allocation2 + $0x11] sm:$0x1] %vm20, 0.0
  %24 = vst.msk [vmem:[#allocation2 + $0x29] sm:$0x1] %vm20, 0.0
  %v25 = vld [vmem:[%s0] sm:$0xff]
  %v26 = vld [vmem:[%s0 + $0x8] sm:$0xff]
  %v27 = vld [vmem:[%s0 + $0x10] sm:$0xff]
  %v28 = vld [vmem:[%s0 + $0x18] sm:$0xff]
  %vm29 = vcmask 523264
  %30 = vst.msk [vmem:[#allocation2 + $0x1] sm:$0xff] %vm29, %v25
  %31 = vst.msk [vmem:[#allocation2 + $0x9] sm:$0xff] %vm29, %v26
  %32 = vst.msk [vmem:[#allocation2 + $0x19] sm:$0xff] %vm29, %v27
  %33 = vst.msk [vmem:[#allocation2 + $0x21] sm:$0xff] %vm29, %v28
  %v34 = vld [vmem:[%s3] sm:$0x1]
  %v36 = vlaneseq
  %v37 = vshrl.u32 %v36, 7
  %v38 = vsub.s32 0, %v37
  %v39 = vrot.slane %v34, %v38
  %v41 = vld [vmem:[#allocation2] sm:$0xff]
  %v42 = vld [vmem:[#allocation2 + $0x8] sm:$0xff]
  %v43 = vld [vmem:[#allocation2 + $0x18] sm:$0xff]
  %v44 = vld [vmem:[#allocation2 + $0x20] sm:$0xff]
  %v45 = vld [vmem:[%s1] sm:$0xff]
  %v46 = vld [vmem:[%s1 + $0x8] sm:$0xff]
  %v47 = vld [vmem:[%s1 + $0x10] sm:$0xff]
  %v48 = vld [vmem:[%s1 + $0x18] sm:$0xff]
  %v49 = vld [vmem:[%s1 + $0x20] sm:$0xff]
  %v50 = vld [vmem:[%s1 + $0x28] sm:$0xff]
  %v51 = vld [vmem:[%s1 + $0x30] sm:$0xff]
  %v52 = vld [vmem:[%s1 + $0x38] sm:$0xff]
  %v54 = vsel %vm29, %v41, 0
  %v57 = vsel %vm29, %v42, 0
  %v60 = vsel %vm29, %v43, 0
  %v63 = vsel %vm29, %v44, 0
  %65 = vmatprep.subr.mxu0 0.0
  %66 = vmatpush1.msra.mxu0 0.0
  %67 = vmatprep.subr.mxu0 0.0
  %68 = vmatpush1.msra.mxu0 0.0
  %69 = vmatprep.subr.mxu0 0.0
  %70 = vmatpush1.msra.mxu0 0.0
  %71 = vmatprep.subr.mxu0 0.0
  %72 = vmatpush1.msra.mxu0 0.0
  %73 = vmatprep.subr.mxu0 0.0
  %74 = vmatpush1.msra.mxu0 0.0
  %75 = vmatprep.subr.mxu0 0.0
  %76 = vmatpush1.msra.mxu0 0.0
  %77 = vmatprep.subr.mxu0 0.0
  %78 = vmatpush1.msra.mxu0 0.0
  %79 = vmatprep.subr.mxu0 0.0
  %80 = vmatpush1.msra.mxu0 0.0
  %81 = vmatprep.subr.mxu0 0.0
  %82 = vmatpush1.msra.mxu0 %v52
  %83 = vmatprep.subr.mxu0 0.0
  %84 = vmatpush1.msra.mxu0 %v51
  %85 = vmatprep.subr.mxu0 0.0
  %86 = vmatpush1.msra.mxu0 %v50
  %87 = vmatprep.subr.mxu0 0.0
  %88 = vmatpush1.msra.mxu0 %v49
  %89 = vmatprep.subr.mxu0 0.0
  %90 = vmatpush1.msra.mxu0 %v48
  %91 = vmatprep.subr.mxu0 0.0
  %92 = vmatpush1.msra.mxu0 %v47
  %93 = vmatprep.subr.mxu0 0.0
  %94 = vmatpush1.msra.mxu0 %v46
  %95 = vmatprep.subr.mxu0 0.0
  %96 = vmatpush1.msra.mxu0 %v45
  %97 = vmatprep.subr.mxu0 0.0
  %98 = vmatpush2.msra.mxu0 0.0
  %99 = vmatprep.subr.mxu0 0.0
  %100 = vmatpush2.msra.mxu0 0.0
  %101 = vmatprep.subr.mxu0 0.0
  %102 = vmatpush2.msra.mxu0 0.0
  %103 = vmatprep.subr.mxu0 0.0
  %104 = vmatpush2.msra.mxu0 0.0
  %105 = vmatprep.subr.mxu0 0.0
  %106 = vmatpush2.msra.mxu0 0.0
  %107 = vmatprep.subr.mxu0 0.0
  %108 = vmatpush2.msra.mxu0 0.0
  %109 = vmatprep.subr.mxu0 0.0
  %110 = vmatpush2.msra.mxu0 0.0
  %111 = vmatprep.subr.mxu0 0.0
  %112 = vmatpush2.msra.mxu0 0.0
  %113 = vmatprep.subr.mxu0 0.0
  %114 = vmatpush2.msra.mxu0 0.0
  %115 = vmatprep.subr.mxu0 0.0
  %116 = vmatpush2.msra.mxu0 0.0
  %117 = vmatprep.subr.mxu0 0.0
  %118 = vmatpush2.msra.mxu0 0.0
  %119 = vmatprep.subr.mxu0 0.0
  %120 = vmatpush2.msra.mxu0 0.0
  %121 = vmatprep.subr.mxu0 0.0
  %122 = vmatpush2.msra.mxu0 0.0
  %123 = vmatprep.subr.mxu0 0.0
  %124 = vmatpush2.msra.mxu0 0.0
  %125 = vmatprep.subr.mxu0 0.0
  %126 = vmatpush2.msra.mxu0 0.0
  %127 = vmatprep.subr.mxu0 0.0
  %128 = vmatpush2.msra.mxu0 0.0
  %129 = vmatprep.mubr.f32.mxu0 0.0
  %130 = vmatmul.mubr.f32.gmra.mxu0 %v54
  %v131 = vpop.f32.mrf.mxu0
  %v132 = vadd.f32 0.0, %v131
  %v133 = vpop.f32.mrf.mxu0
  %134 = vmatprep.mubr.f32.mxu0 0.0
  %135 = vmatmul.mubr.f32.gmra.mxu0 %v57
  %v136 = vpop.f32.mrf.mxu0
  %v137 = vadd.f32 0.0, %v136
  %v138 = vpop.f32.mrf.mxu0
  %139 = vmatprep.mubr.f32.mxu0 0.0
  %140 = vmatmul.mubr.f32.gmra.mxu0 %v60
  %v141 = vpop.f32.mrf.mxu0
  %v142 = vadd.f32 0.0, %v141
  %v143 = vpop.f32.mrf.mxu0
  %144 = vmatprep.mubr.f32.mxu0 0.0
  %145 = vmatmul.mubr.f32.gmra.mxu0 %v63
  %v146 = vpop.f32.mrf.mxu0
  %v147 = vadd.f32 0.0, %v146
  %v148 = vpop.f32.mrf.mxu0
  %149 = vdwg.mxu0
  %v150 = vadd.f32 %v39, %v132
  %v151 = vadd.f32 %v39, %v137
  %v152 = vadd.f32 %v39, %v142
  %v153 = vadd.f32 %v39, %v147
  %v154 = vld [vmem:[#allocation2 + $0x1] sm:$0xff]
  %v155 = vld [vmem:[#allocation2 + $0x9] sm:$0xff]
  %v156 = vld [vmem:[#allocation2 + $0x19] sm:$0xff]
  %v157 = vld [vmem:[#allocation2 + $0x21] sm:$0xff]
  %s158 = scalar_lea.vmem %s1, 64
  %v159 = vld [vmem:[%s158] sm:$0xff]
  %v160 = vld [vmem:[%s158 + $0x8] sm:$0xff]
  %v161 = vld [vmem:[%s158 + $0x10] sm:$0xff]
  %v162 = vld [vmem:[%s158 + $0x18] sm:$0xff]
  %v163 = vld [vmem:[%s158 + $0x20] sm:$0xff]
  %v164 = vld [vmem:[%s158 + $0x28] sm:$0xff]
  %v165 = vld [vmem:[%s158 + $0x30] sm:$0xff]
  %v166 = vld [vmem:[%s158 + $0x38] sm:$0xff]
  %v168 = vsel %vm29, %v154, 0
  %v171 = vsel %vm29, %v155, 0
  %v174 = vsel %vm29, %v156, 0
  %v177 = vsel %vm29, %v157, 0
  %179 = vmatprep.subr.mxu0 0.0
  %180 = vmatpush1.msra.mxu0 0.0
  %181 = vmatprep.subr.mxu0 0.0
  %182 = vmatpush1.msra.mxu0 0.0
  %183 = vmatprep.subr.mxu0 0.0
  %184 = vmatpush1.msra.mxu0 0.0
  %185 = vmatprep.subr.mxu0 0.0
  %186 = vmatpush1.msra.mxu0 0.0
  %187 = vmatprep.subr.mxu0 0.0
  %188 = vmatpush1.msra.mxu0 0.0
  %189 = vmatprep.subr.mxu0 0.0
  %190 = vmatpush1.msra.mxu0 0.0
  %191 = vmatprep.subr.mxu0 0.0
  %192 = vmatpush1.msra.mxu0 0.0
  %193 = vmatprep.subr.mxu0 0.0
  %194 = vmatpush1.msra.mxu0 0.0
  %195 = vmatprep.subr.mxu0 0.0
  %196 = vmatpush1.msra.mxu0 %v166
  %197 = vmatprep.subr.mxu0 0.0
  %198 = vmatpush1.msra.mxu0 %v165
  %199 = vmatprep.subr.mxu0 0.0
  %200 = vmatpush1.msra.mxu0 %v164
  %201 = vmatprep.subr.mxu0 0.0
  %202 = vmatpush1.msra.mxu0 %v163
  %203 = vmatprep.subr.mxu0 0.0
  %204 = vmatpush1.msra.mxu0 %v162
  %205 = vmatprep.subr.mxu0 0.0
  %206 = vmatpush1.msra.mxu0 %v161
  %207 = vmatprep.subr.mxu0 0.0
  %208 = vmatpush1.msra.mxu0 %v160
  %209 = vmatprep.subr.mxu0 0.0
  %210 = vmatpush1.msra.mxu0 %v159
  %211 = vmatprep.subr.mxu0 0.0
  %212 = vmatpush2.msra.mxu0 0.0
  %213 = vmatprep.subr.mxu0 0.0
  %214 = vmatpush2.msra.mxu0 0.0
  %215 = vmatprep.subr.mxu0 0.0
  %216 = vmatpush2.msra.mxu0 0.0
  %217 = vmatprep.subr.mxu0 0.0
  %218 = vmatpush2.msra.mxu0 0.0
  %219 = vmatprep.subr.mxu0 0.0
  %220 = vmatpush2.msra.mxu0 0.0
  %221 = vmatprep.subr.mxu0 0.0
  %222 = vmatpush2.msra.mxu0 0.0
  %223 = vmatprep.subr.mxu0 0.0
  %224 = vmatpush2.msra.mxu0 0.0
  %225 = vmatprep.subr.mxu0 0.0
  %226 = vmatpush2.msra.mxu0 0.0
  %227 = vmatprep.subr.mxu0 0.0
  %228 = vmatpush2.msra.mxu0 0.0
  %229 = vmatprep.subr.mxu0 0.0
  %230 = vmatpush2.msra.mxu0 0.0
  %231 = vmatprep.subr.mxu0 0.0
  %232 = vmatpush2.msra.mxu0 0.0
  %233 = vmatprep.subr.mxu0 0.0
  %234 = vmatpush2.msra.mxu0 0.0
  %235 = vmatprep.subr.mxu0 0.0
  %236 = vmatpush2.msra.mxu0 0.0
  %237 = vmatprep.subr.mxu0 0.0
  %238 = vmatpush2.msra.mxu0 0.0
  %239 = vmatprep.subr.mxu0 0.0
  %240 = vmatpush2.msra.mxu0 0.0
  %241 = vmatprep.subr.mxu0 0.0
  %242 = vmatpush2.msra.mxu0 0.0
  %243 = vmatprep.mubr.f32.mxu0 0.0
  %244 = vmatmul.mubr.f32.gmra.mxu0 %v168
  %v245 = vpop.f32.mrf.mxu0
  %v246 = vadd.f32 0.0, %v245
  %v247 = vpop.f32.mrf.mxu0
  %248 = vmatprep.mubr.f32.mxu0 0.0
  %249 = vmatmul.mubr.f32.gmra.mxu0 %v171
  %v250 = vpop.f32.mrf.mxu0
  %v251 = vadd.f32 0.0, %v250
  %v252 = vpop.f32.mrf.mxu0
  %253 = vmatprep.mubr.f32.mxu0 0.0
  %254 = vmatmul.mubr.f32.gmra.mxu0 %v174
  %v255 = vpop.f32.mrf.mxu0
  %v256 = vadd.f32 0.0, %v255
  %v257 = vpop.f32.mrf.mxu0
  %258 = vmatprep.mubr.f32.mxu0 0.0
  %259 = vmatmul.mubr.f32.gmra.mxu0 %v177
  %v260 = vpop.f32.mrf.mxu0
  %v261 = vadd.f32 0.0, %v260
  %v262 = vpop.f32.mrf.mxu0
  %263 = vdwg.mxu0
  %v264 = vadd.f32 %v150, %v246
  %v265 = vadd.f32 %v151, %v251
  %v266 = vadd.f32 %v152, %v256
  %v267 = vadd.f32 %v153, %v261
  %v268 = vld [vmem:[#allocation2 + $0x2] sm:$0xff]
  %v269 = vld [vmem:[#allocation2 + $0xa] sm:$0xff]
  %v270 = vld [vmem:[#allocation2 + $0x1a] sm:$0xff]
  %v271 = vld [vmem:[#allocation2 + $0x22] sm:$0xff]
  %s272 = scalar_lea.vmem %s1, 128
  %v273 = vld [vmem:[%s272] sm:$0xff]
  %v274 = vld [vmem:[%s272 + $0x8] sm:$0xff]
  %v275 = vld [vmem:[%s272 + $0x10] sm:$0xff]
  %v276 = vld [vmem:[%s272 + $0x18] sm:$0xff]
  %v277 = vld [vmem:[%s272 + $0x20] sm:$0xff]
  %v278 = vld [vmem:[%s272 + $0x28] sm:$0xff]
  %v279 = vld [vmem:[%s272 + $0x30] sm:$0xff]
  %v280 = vld [vmem:[%s272 + $0x38] sm:$0xff]
  %v282 = vsel %vm29, %v268, 0
  %v285 = vsel %vm29, %v269, 0
  %v288 = vsel %vm29, %v270, 0
  %v291 = vsel %vm29, %v271, 0
  %293 = vmatprep.subr.mxu0 0.0
  %294 = vmatpush1.msra.mxu0 0.0
  %295 = vmatprep.subr.mxu0 0.0
  %296 = vmatpush1.msra.mxu0 0.0
  %297 = vmatprep.subr.mxu0 0.0
  %298 = vmatpush1.msra.mxu0 0.0
  %299 = vmatprep.subr.mxu0 0.0
  %300 = vmatpush1.msra.mxu0 0.0
  %301 = vmatprep.subr.mxu0 0.0
  %302 = vmatpush1.msra.mxu0 0.0
  %303 = vmatprep.subr.mxu0 0.0
  %304 = vmatpush1.msra.mxu0 0.0
  %305 = vmatprep.subr.mxu0 0.0
  %306 = vmatpush1.msra.mxu0 0.0
  %307 = vmatprep.subr.mxu0 0.0
  %308 = vmatpush1.msra.mxu0 0.0
  %309 = vmatprep.subr.mxu0 0.0
  %310 = vmatpush1.msra.mxu0 %v280
  %311 = vmatprep.subr.mxu0 0.0
  %312 = vmatpush1.msra.mxu0 %v279
  %313 = vmatprep.subr.mxu0 0.0
  %314 = vmatpush1.msra.mxu0 %v278
  %315 = vmatprep.subr.mxu0 0.0
  %316 = vmatpush1.msra.mxu0 %v277
  %317 = vmatprep.subr.mxu0 0.0
  %318 = vmatpush1.msra.mxu0 %v276
  %319 = vmatprep.subr.mxu0 0.0
  %320 = vmatpush1.msra.mxu0 %v275
  %321 = vmatprep.subr.mxu0 0.0
  %322 = vmatpush1.msra.mxu0 %v274
  %323 = vmatprep.subr.mxu0 0.0
  %324 = vmatpush1.msra.mxu0 %v273
  %325 = vmatprep.subr.mxu0 0.0
  %326 = vmatpush2.msra.mxu0 0.0
  %327 = vmatprep.subr.mxu0 0.0
  %328 = vmatpush2.msra.mxu0 0.0
  %329 = vmatprep.subr.mxu0 0.0
  %330 = vmatpush2.msra.mxu0 0.0
  %331 = vmatprep.subr.mxu0 0.0
  %332 = vmatpush2.msra.mxu0 0.0
  %333 = vmatprep.subr.mxu0 0.0
  %334 = vmatpush2.msra.mxu0 0.0
  %335 = vmatprep.subr.mxu0 0.0
  %336 = vmatpush2.msra.mxu0 0.0
  %337 = vmatprep.subr.mxu0 0.0
  %338 = vmatpush2.msra.mxu0 0.0
  %339 = vmatprep.subr.mxu0 0.0
  %340 = vmatpush2.msra.mxu0 0.0
  %341 = vmatprep.subr.mxu0 0.0
  %342 = vmatpush2.msra.mxu0 0.0
  %343 = vmatprep.subr.mxu0 0.0
  %344 = vmatpush2.msra.mxu0 0.0
  %345 = vmatprep.subr.mxu0 0.0
  %346 = vmatpush2.msra.mxu0 0.0
  %347 = vmatprep.subr.mxu0 0.0
  %348 = vmatpush2.msra.mxu0 0.0
  %349 = vmatprep.subr.mxu0 0.0
  %350 = vmatpush2.msra.mxu0 0.0
  %351 = vmatprep.subr.mxu0 0.0
  %352 = vmatpush2.msra.mxu0 0.0
  %353 = vmatprep.subr.mxu0 0.0
  %354 = vmatpush2.msra.mxu0 0.0
  %355 = vmatprep.subr.mxu0 0.0
  %356 = vmatpush2.msra.mxu0 0.0
  %357 = vmatprep.mubr.f32.mxu0 0.0
  %358 = vmatmul.mubr.f32.gmra.mxu0 %v282
  %v359 = vpop.f32.mrf.mxu0
  %v360 = vadd.f32 0.0, %v359
  %v361 = vpop.f32.mrf.mxu0
  %362 = vmatprep.mubr.f32.mxu0 0.0
  %363 = vmatmul.mubr.f32.gmra.mxu0 %v285
  %v364 = vpop.f32.mrf.mxu0
  %v365 = vadd.f32 0.0, %v364
  %v366 = vpop.f32.mrf.mxu0
  %367 = vmatprep.mubr.f32.mxu0 0.0
  %368 = vmatmul.mubr.f32.gmra.mxu0 %v288
  %v369 = vpop.f32.mrf.mxu0
  %v370 = vadd.f32 0.0, %v369
  %v371 = vpop.f32.mrf.mxu0
  %372 = vmatprep.mubr.f32.mxu0 0.0
  %373 = vmatmul.mubr.f32.gmra.mxu0 %v291
  %v374 = vpop.f32.mrf.mxu0
  %v375 = vadd.f32 0.0, %v374
  %v376 = vpop.f32.mrf.mxu0
  %377 = vdwg.mxu0
  %v378 = vadd.f32 %v264, %v360
  %v379 = vadd.f32 %v265, %v365
  %v380 = vadd.f32 %v266, %v370
  %v381 = vadd.f32 %v267, %v375
  %v382 = vmax.f32 %v378, 0.0
  %v383 = vmax.f32 %v379, 0.0
  %v384 = vmax.f32 %v380, 0.0
  %v385 = vmax.f32 %v381, 0.0
  %386 = vst [vmem:[#allocation3] sm:$0x1] 0.0
  %387 = vst [vmem:[#allocation3 + $0x18] sm:$0x1] 0.0
  %388 = vst [vmem:[#allocation3 + $0x11] sm:$0x1] 0.0
  %389 = vst [vmem:[#allocation3 + $0x29] sm:$0x1] 0.0
  %390 = vst [vmem:[#allocation3 + $0x1] sm:$0xff] %v382
  %391 = vst [vmem:[#allocation3 + $0x9] sm:$0xff] %v383
  %392 = vst [vmem:[#allocation3 + $0x19] sm:$0xff] %v384
  %393 = vst [vmem:[#allocation3 + $0x21] sm:$0xff] %v385
  %v394 = vld [vmem:[%s4] sm:$0x1]
  %v396 = vlaneseq
  %v397 = vshrl.u32 %v396, 7
  %v398 = vsub.s32 0, %v397
  %v399 = vrot.slane %v394, %v398
  %v401 = vld [vmem:[#allocation3] sm:$0xff]
  %v402 = vld [vmem:[#allocation3 + $0x8] sm:$0xff]
  %v403 = vld [vmem:[#allocation3 + $0x18] sm:$0xff]
  %v404 = vld [vmem:[#allocation3 + $0x20] sm:$0xff]
  %v405 = vld [vmem:[%s2] sm:$0xff]
  %v406 = vld [vmem:[%s2 + $0x8] sm:$0xff]
  %v407 = vld [vmem:[%s2 + $0x10] sm:$0xff]
  %v408 = vld [vmem:[%s2 + $0x18] sm:$0xff]
  %v409 = vld [vmem:[%s2 + $0x20] sm:$0xff]
  %v410 = vld [vmem:[%s2 + $0x28] sm:$0xff]
  %v411 = vld [vmem:[%s2 + $0x30] sm:$0xff]
  %v412 = vld [vmem:[%s2 + $0x38] sm:$0xff]
  %v413 = vld [vmem:[%s2 + $0x40] sm:$0xff]
  %v414 = vld [vmem:[%s2 + $0x48] sm:$0xff]
  %v415 = vld [vmem:[%s2 + $0x50] sm:$0xff]
  %v416 = vld [vmem:[%s2 + $0x58] sm:$0xff]
  %v417 = vld [vmem:[%s2 + $0x60] sm:$0xff]
  %v418 = vld [vmem:[%s2 + $0x68] sm:$0xff]
  %v419 = vld [vmem:[%s2 + $0x70] sm:$0xff]
  %v420 = vld [vmem:[%s2 + $0x78] sm:$0xff]
  %421 = vmatprep.subr.mxu0 0.0
  %422 = vmatpush1.msra.mxu0 %v420
  %423 = vmatprep.subr.mxu0 0.0
  %424 = vmatpush1.msra.mxu0 %v419
  %425 = vmatprep.subr.mxu0 0.0
  %426 = vmatpush1.msra.mxu0 %v418
  %427 = vmatprep.subr.mxu0 0.0
  %428 = vmatpush1.msra.mxu0 %v417
  %429 = vmatprep.subr.mxu0 0.0
  %430 = vmatpush1.msra.mxu0 %v416
  %431 = vmatprep.subr.mxu0 0.0
  %432 = vmatpush1.msra.mxu0 %v415
  %433 = vmatprep.subr.mxu0 0.0
  %434 = vmatpush1.msra.mxu0 %v414
  %435 = vmatprep.subr.mxu0 0.0
  %436 = vmatpush1.msra.mxu0 %v413
  %437 = vmatprep.subr.mxu0 0.0
  %438 = vmatpush1.msra.mxu0 %v412
  %439 = vmatprep.subr.mxu0 0.0
  %440 = vmatpush1.msra.mxu0 %v411
  %441 = vmatprep.subr.mxu0 0.0
  %442 = vmatpush1.msra.mxu0 %v410
  %443 = vmatprep.subr.mxu0 0.0
  %444 = vmatpush1.msra.mxu0 %v409
  %445 = vmatprep.subr.mxu0 0.0
  %446 = vmatpush1.msra.mxu0 %v408
  %447 = vmatprep.subr.mxu0 0.0
  %448 = vmatpush1.msra.mxu0 %v407
  %449 = vmatprep.subr.mxu0 0.0
  %450 = vmatpush1.msra.mxu0 %v406
  %451 = vmatprep.subr.mxu0 0.0
  %452 = vmatpush1.msra.mxu0 %v405
  %453 = vmatprep.subr.mxu0 0.0
  %454 = vmatpush2.msra.mxu0 0.0
  %455 = vmatprep.subr.mxu0 0.0
  %456 = vmatpush2.msra.mxu0 0.0
  %457 = vmatprep.subr.mxu0 0.0
  %458 = vmatpush2.msra.mxu0 0.0
  %459 = vmatprep.subr.mxu0 0.0
  %460 = vmatpush2.msra.mxu0 0.0
  %461 = vmatprep.subr.mxu0 0.0
  %462 = vmatpush2.msra.mxu0 0.0
  %463 = vmatprep.subr.mxu0 0.0
  %464 = vmatpush2.msra.mxu0 0.0
  %465 = vmatprep.subr.mxu0 0.0
  %466 = vmatpush2.msra.mxu0 0.0
  %467 = vmatprep.subr.mxu0 0.0
  %468 = vmatpush2.msra.mxu0 0.0
  %469 = vmatprep.subr.mxu0 0.0
  %470 = vmatpush2.msra.mxu0 0.0
  %471 = vmatprep.subr.mxu0 0.0
  %472 = vmatpush2.msra.mxu0 0.0
  %473 = vmatprep.subr.mxu0 0.0
  %474 = vmatpush2.msra.mxu0 0.0
  %475 = vmatprep.subr.mxu0 0.0
  %476 = vmatpush2.msra.mxu0 0.0
  %477 = vmatprep.subr.mxu0 0.0
  %478 = vmatpush2.msra.mxu0 0.0
  %479 = vmatprep.subr.mxu0 0.0
  %480 = vmatpush2.msra.mxu0 0.0
  %481 = vmatprep.subr.mxu0 0.0
  %482 = vmatpush2.msra.mxu0 0.0
  %483 = vmatprep.subr.mxu0 0.0
  %484 = vmatpush2.msra.mxu0 0.0
  %485 = vmatprep.mubr.f32.mxu0 0.0
  %486 = vmatmul.mubr.f32.gmra.mxu0 %v401
  %v487 = vpop.f32.mrf.mxu0
  %v488 = vadd.f32 0.0, %v487
  %v489 = vpop.f32.mrf.mxu0
  %490 = vmatprep.mubr.f32.mxu0 0.0
  %491 = vmatmul.mubr.f32.gmra.mxu0 %v402
  %v492 = vpop.f32.mrf.mxu0
  %v493 = vadd.f32 0.0, %v492
  %v494 = vpop.f32.mrf.mxu0
  %495 = vmatprep.mubr.f32.mxu0 0.0
  %496 = vmatmul.mubr.f32.gmra.mxu0 %v403
  %v497 = vpop.f32.mrf.mxu0
  %v498 = vadd.f32 0.0, %v497
  %v499 = vpop.f32.mrf.mxu0
  %500 = vmatprep.mubr.f32.mxu0 0.0
  %501 = vmatmul.mubr.f32.gmra.mxu0 %v404
  %v502 = vpop.f32.mrf.mxu0
  %v503 = vadd.f32 0.0, %v502
  %v504 = vpop.f32.mrf.mxu0
  %505 = vdwg.mxu0
  %v506 = vadd.f32 %v399, %v488
  %v507 = vadd.f32 %v399, %v493
  %v508 = vadd.f32 %v399, %v498
  %v509 = vadd.f32 %v399, %v503
  %v510 = vld [vmem:[#allocation3 + $0x1] sm:$0xff]
  %v511 = vld [vmem:[#allocation3 + $0x9] sm:$0xff]
  %v512 = vld [vmem:[#allocation3 + $0x19] sm:$0xff]
  %v513 = vld [vmem:[#allocation3 + $0x21] sm:$0xff]
  %s514 = scalar_lea.vmem %s2, 128
  %v515 = vld [vmem:[%s514] sm:$0xff]
  %v516 = vld [vmem:[%s514 + $0x8] sm:$0xff]
  %v517 = vld [vmem:[%s514 + $0x10] sm:$0xff]
  %v518 = vld [vmem:[%s514 + $0x18] sm:$0xff]
  %v519 = vld [vmem:[%s514 + $0x20] sm:$0xff]
  %v520 = vld [vmem:[%s514 + $0x28] sm:$0xff]
  %v521 = vld [vmem:[%s514 + $0x30] sm:$0xff]
  %v522 = vld [vmem:[%s514 + $0x38] sm:$0xff]
  %v523 = vld [vmem:[%s514 + $0x40] sm:$0xff]
  %v524 = vld [vmem:[%s514 + $0x48] sm:$0xff]
  %v525 = vld [vmem:[%s514 + $0x50] sm:$0xff]
  %v526 = vld [vmem:[%s514 + $0x58] sm:$0xff]
  %v527 = vld [vmem:[%s514 + $0x60] sm:$0xff]
  %v528 = vld [vmem:[%s514 + $0x68] sm:$0xff]
  %v529 = vld [vmem:[%s514 + $0x70] sm:$0xff]
  %v530 = vld [vmem:[%s514 + $0x78] sm:$0xff]
  %531 = vmatprep.subr.mxu0 0.0
  %532 = vmatpush1.msra.mxu0 %v530
  %533 = vmatprep.subr.mxu0 0.0
  %534 = vmatpush1.msra.mxu0 %v529
  %535 = vmatprep.subr.mxu0 0.0
  %536 = vmatpush1.msra.mxu0 %v528
  %537 = vmatprep.subr.mxu0 0.0
  %538 = vmatpush1.msra.mxu0 %v527
  %539 = vmatprep.subr.mxu0 0.0
  %540 = vmatpush1.msra.mxu0 %v526
  %541 = vmatprep.subr.mxu0 0.0
  %542 = vmatpush1.msra.mxu0 %v525
  %543 = vmatprep.subr.mxu0 0.0
  %544 = vmatpush1.msra.mxu0 %v524
  %545 = vmatprep.subr.mxu0 0.0
  %546 = vmatpush1.msra.mxu0 %v523
  %547 = vmatprep.subr.mxu0 0.0
  %548 = vmatpush1.msra.mxu0 %v522
  %549 = vmatprep.subr.mxu0 0.0
  %550 = vmatpush1.msra.mxu0 %v521
  %551 = vmatprep.subr.mxu0 0.0
  %552 = vmatpush1.msra.mxu0 %v520
  %553 = vmatprep.subr.mxu0 0.0
  %554 = vmatpush1.msra.mxu0 %v519
  %555 = vmatprep.subr.mxu0 0.0
  %556 = vmatpush1.msra.mxu0 %v518
  %557 = vmatprep.subr.mxu0 0.0
  %558 = vmatpush1.msra.mxu0 %v517
  %559 = vmatprep.subr.mxu0 0.0
  %560 = vmatpush1.msra.mxu0 %v516
  %561 = vmatprep.subr.mxu0 0.0
  %562 = vmatpush1.msra.mxu0 %v515
  %563 = vmatprep.subr.mxu0 0.0
  %564 = vmatpush2.msra.mxu0 0.0
  %565 = vmatprep.subr.mxu0 0.0
  %566 = vmatpush2.msra.mxu0 0.0
  %567 = vmatprep.subr.mxu0 0.0
  %568 = vmatpush2.msra.mxu0 0.0
  %569 = vmatprep.subr.mxu0 0.0
  %570 = vmatpush2.msra.mxu0 0.0
  %571 = vmatprep.subr.mxu0 0.0
  %572 = vmatpush2.msra.mxu0 0.0
  %573 = vmatprep.subr.mxu0 0.0
  %574 = vmatpush2.msra.mxu0 0.0
  %575 = vmatprep.subr.mxu0 0.0
  %576 = vmatpush2.msra.mxu0 0.0
  %577 = vmatprep.subr.mxu0 0.0
  %578 = vmatpush2.msra.mxu0 0.0
  %579 = vmatprep.subr.mxu0 0.0
  %580 = vmatpush2.msra.mxu0 0.0
  %581 = vmatprep.subr.mxu0 0.0
  %582 = vmatpush2.msra.mxu0 0.0
  %583 = vmatprep.subr.mxu0 0.0
  %584 = vmatpush2.msra.mxu0 0.0
  %585 = vmatprep.subr.mxu0 0.0
  %586 = vmatpush2.msra.mxu0 0.0
  %587 = vmatprep.subr.mxu0 0.0
  %588 = vmatpush2.msra.mxu0 0.0
  %589 = vmatprep.subr.mxu0 0.0
  %590 = vmatpush2.msra.mxu0 0.0
  %591 = vmatprep.subr.mxu0 0.0
  %592 = vmatpush2.msra.mxu0 0.0
  %593 = vmatprep.subr.mxu0 0.0
  %594 = vmatpush2.msra.mxu0 0.0
  %595 = vmatprep.mubr.f32.mxu0 0.0
  %596 = vmatmul.mubr.f32.gmra.mxu0 %v510
  %v597 = vpop.f32.mrf.mxu0
  %v598 = vadd.f32 0.0, %v597
  %v599 = vpop.f32.mrf.mxu0
  %600 = vmatprep.mubr.f32.mxu0 0.0
  %601 = vmatmul.mubr.f32.gmra.mxu0 %v511
  %v602 = vpop.f32.mrf.mxu0
  %v603 = vadd.f32 0.0, %v602
  %v604 = vpop.f32.mrf.mxu0
  %605 = vmatprep.mubr.f32.mxu0 0.0
  %606 = vmatmul.mubr.f32.gmra.mxu0 %v512
  %v607 = vpop.f32.mrf.mxu0
  %v608 = vadd.f32 0.0, %v607
  %v609 = vpop.f32.mrf.mxu0
  %610 = vmatprep.mubr.f32.mxu0 0.0
  %611 = vmatmul.mubr.f32.gmra.mxu0 %v513
  %v612 = vpop.f32.mrf.mxu0
  %v613 = vadd.f32 0.0, %v612
  %v614 = vpop.f32.mrf.mxu0
  %615 = vdwg.mxu0
  %v616 = vadd.f32 %v506, %v598
  %v617 = vadd.f32 %v507, %v603
  %v618 = vadd.f32 %v508, %v608
  %v619 = vadd.f32 %v509, %v613
  %v620 = vld [vmem:[#allocation3 + $0x2] sm:$0xff]
  %v621 = vld [vmem:[#allocation3 + $0xa] sm:$0xff]
  %v622 = vld [vmem:[#allocation3 + $0x1a] sm:$0xff]
  %v623 = vld [vmem:[#allocation3 + $0x22] sm:$0xff]
  %s624 = scalar_lea.vmem %s2, 256
  %v625 = vld [vmem:[%s624] sm:$0xff]
  %v626 = vld [vmem:[%s624 + $0x8] sm:$0xff]
  %v627 = vld [vmem:[%s624 + $0x10] sm:$0xff]
  %v628 = vld [vmem:[%s624 + $0x18] sm:$0xff]
  %v629 = vld [vmem:[%s624 + $0x20] sm:$0xff]
  %v630 = vld [vmem:[%s624 + $0x28] sm:$0xff]
  %v631 = vld [vmem:[%s624 + $0x30] sm:$0xff]
  %v632 = vld [vmem:[%s624 + $0x38] sm:$0xff]
  %v633 = vld [vmem:[%s624 + $0x40] sm:$0xff]
  %v634 = vld [vmem:[%s624 + $0x48] sm:$0xff]
  %v635 = vld [vmem:[%s624 + $0x50] sm:$0xff]
  %v636 = vld [vmem:[%s624 + $0x58] sm:$0xff]
  %v637 = vld [vmem:[%s624 + $0x60] sm:$0xff]
  %v638 = vld [vmem:[%s624 + $0x68] sm:$0xff]
  %v639 = vld [vmem:[%s624 + $0x70] sm:$0xff]
  %v640 = vld [vmem:[%s624 + $0x78] sm:$0xff]
  %641 = vmatprep.subr.mxu0 0.0
  %642 = vmatpush1.msra.mxu0 %v640
  %643 = vmatprep.subr.mxu0 0.0
  %644 = vmatpush1.msra.mxu0 %v639
  %645 = vmatprep.subr.mxu0 0.0
  %646 = vmatpush1.msra.mxu0 %v638
  %647 = vmatprep.subr.mxu0 0.0
  %648 = vmatpush1.msra.mxu0 %v637
  %649 = vmatprep.subr.mxu0 0.0
  %650 = vmatpush1.msra.mxu0 %v636
  %651 = vmatprep.subr.mxu0 0.0
  %652 = vmatpush1.msra.mxu0 %v635
  %653 = vmatprep.subr.mxu0 0.0
  %654 = vmatpush1.msra.mxu0 %v634
  %655 = vmatprep.subr.mxu0 0.0
  %656 = vmatpush1.msra.mxu0 %v633
  %657 = vmatprep.subr.mxu0 0.0
  %658 = vmatpush1.msra.mxu0 %v632
  %659 = vmatprep.subr.mxu0 0.0
  %660 = vmatpush1.msra.mxu0 %v631
  %661 = vmatprep.subr.mxu0 0.0
  %662 = vmatpush1.msra.mxu0 %v630
  %663 = vmatprep.subr.mxu0 0.0
  %664 = vmatpush1.msra.mxu0 %v629
  %665 = vmatprep.subr.mxu0 0.0
  %666 = vmatpush1.msra.mxu0 %v628
  %667 = vmatprep.subr.mxu0 0.0
  %668 = vmatpush1.msra.mxu0 %v627
  %669 = vmatprep.subr.mxu0 0.0
  %670 = vmatpush1.msra.mxu0 %v626
  %671 = vmatprep.subr.mxu0 0.0
  %672 = vmatpush1.msra.mxu0 %v625
  %673 = vmatprep.subr.mxu0 0.0
  %674 = vmatpush2.msra.mxu0 0.0
  %675 = vmatprep.subr.mxu0 0.0
  %676 = vmatpush2.msra.mxu0 0.0
  %677 = vmatprep.subr.mxu0 0.0
  %678 = vmatpush2.msra.mxu0 0.0
  %679 = vmatprep.subr.mxu0 0.0
  %680 = vmatpush2.msra.mxu0 0.0
  %681 = vmatprep.subr.mxu0 0.0
  %682 = vmatpush2.msra.mxu0 0.0
  %683 = vmatprep.subr.mxu0 0.0
  %684 = vmatpush2.msra.mxu0 0.0
  %685 = vmatprep.subr.mxu0 0.0
  %686 = vmatpush2.msra.mxu0 0.0
  %687 = vmatprep.subr.mxu0 0.0
  %688 = vmatpush2.msra.mxu0 0.0
  %689 = vmatprep.subr.mxu0 0.0
  %690 = vmatpush2.msra.mxu0 0.0
  %691 = vmatprep.subr.mxu0 0.0
  %692 = vmatpush2.msra.mxu0 0.0
  %693 = vmatprep.subr.mxu0 0.0
  %694 = vmatpush2.msra.mxu0 0.0
  %695 = vmatprep.subr.mxu0 0.0
  %696 = vmatpush2.msra.mxu0 0.0
  %697 = vmatprep.subr.mxu0 0.0
  %698 = vmatpush2.msra.mxu0 0.0
  %699 = vmatprep.subr.mxu0 0.0
  %700 = vmatpush2.msra.mxu0 0.0
  %701 = vmatprep.subr.mxu0 0.0
  %702 = vmatpush2.msra.mxu0 0.0
  %703 = vmatprep.subr.mxu0 0.0
  %704 = vmatpush2.msra.mxu0 0.0
  %705 = vmatprep.mubr.f32.mxu0 0.0
  %706 = vmatmul.mubr.f32.gmra.mxu0 %v620
  %v707 = vpop.f32.mrf.mxu0
  %v708 = vadd.f32 0.0, %v707
  %v709 = vpop.f32.mrf.mxu0
  %710 = vmatprep.mubr.f32.mxu0 0.0
  %711 = vmatmul.mubr.f32.gmra.mxu0 %v621
  %v712 = vpop.f32.mrf.mxu0
  %v713 = vadd.f32 0.0, %v712
  %v714 = vpop.f32.mrf.mxu0
  %715 = vmatprep.mubr.f32.mxu0 0.0
  %716 = vmatmul.mubr.f32.gmra.mxu0 %v622
  %v717 = vpop.f32.mrf.mxu0
  %v718 = vadd.f32 0.0, %v717
  %v719 = vpop.f32.mrf.mxu0
  %720 = vmatprep.mubr.f32.mxu0 0.0
  %721 = vmatmul.mubr.f32.gmra.mxu0 %v623
  %v722 = vpop.f32.mrf.mxu0
  %v723 = vadd.f32 0.0, %v722
  %v724 = vpop.f32.mrf.mxu0
  %725 = vdwg.mxu0
  %v726 = vadd.f32 %v616, %v708
  %v727 = vadd.f32 %v617, %v713
  %v728 = vadd.f32 %v618, %v718
  %v729 = vadd.f32 %v619, %v723
  %v730 = vmax.f32 %v726, 0.0
  %v731 = vmax.f32 %v727, 0.0
  %v732 = vmax.f32 %v728, 0.0
  %v733 = vmax.f32 %v729, 0.0
  %734 = vst [vmem:[%s5] sm:$0xff] %v730
  %735 = vst [vmem:[%s5 + $0x8] sm:$0xff] %v731
  %736 = vst [vmem:[%s5 + $0x10] sm:$0xff] %v732
  %737 = vst [vmem:[%s5 + $0x18] sm:$0xff] %v733
  // Predicated region
  $region22: #{double_conv.1} parent=0 // pred_check
    _
  $region23: #{double_conv.1} parent=0 // pred_check_branch
    %739 = sbr.rel (0) target = $region25
  $region24: #{double_conv.1} parent=0 // pred_region
    _
  $region25: #{double_conv.1} parent=0 // pred_fallthru
    _
  // Predicated region
  $region26: #{double_conv.1} parent=0 // pred_check
    _
  $region27: #{double_conv.1} parent=0 // pred_check_branch
    %741 = sbr.rel (0) target = $region29
  $region28: #{double_conv.1} parent=0 // pred_region
    _
  $region29: #{double_conv.1} parent=0 // pred_fallthru
    _

</llo_original>
